<compile_context>
chip_gen: v7x
topology: tpu7x:2x2x1
jax: 0.10.0
libtpu: 0.0.40
codegen_flags: <defaults>
</compile_context>

<pallas_src>
import functools

import jax
import jax.numpy as jnp
from jax.experimental import pallas as pl
from jax.experimental.pallas import tpu as pltpu


def _decoder_norm_kernel(alpha_ref, bias_ref, x_ref, o_ref, *, eps):
    """PyTorch-style LayerNorm over the last axis (unbiased std, eps on std)."""
    x = x_ref[...].astype(jnp.float32)            # (tile_n, D)
    d = x.shape[-1]
    # torch.std defaults to the unbiased estimator (divide by d - 1).
    # Guard d == 1 to avoid a divide-by-zero at trace time.
    denom = jnp.float32(d - 1 if d > 1 else 1)
    # Two independent cross-lane reductions (no serial mean -> diff -> sum
    # chain, no (tile_n, D) diff temp).
    s = jnp.sum(x, axis=-1, keepdims=True)
    ss = jnp.sum(x * x, axis=-1, keepdims=True)
    mean = s * jnp.float32(1.0 / d)
    var = jnp.maximum((ss - s * mean) / denom, jnp.float32(0.0))
    std = jnp.sqrt(var)
    # One reciprocal per row (EUP) instead of D divides per row (VALU).
    inv = pl.reciprocal(std + jnp.float32(eps), approx=False)
    scale = alpha_ref[0].astype(jnp.float32) * inv
    shift = bias_ref[0].astype(jnp.float32) - mean * scale
    # Single fused multiply-add over the tile.
    o_ref[...] = (x * scale + shift).astype(o_ref.dtype)


def _vmem_budget():
    """(per_buffer_bytes, vmem_limit_cap) sized for the current TPU generation."""
    cap = None
    try:
        cap = getattr(pltpu.get_tpu_info(), "vmem_capacity_bytes", None)
    except Exception:  # pragma: no cover - info query unavailable
        cap = None
    if cap is not None and cap >= (100 << 20):
        # v5e / v6e: 128 MiB physical VMEM -> larger tiles, higher scoped limit.
        return 8 << 20, 80 << 20
    # v7x (64 MiB per TC) or unknown generation: stay conservative.
    return 3 << 20, 48 << 20


def layer_norm_pallas(x, alpha, bias, eps=1e-6):
    """x: (..., d_model). alpha, bias: shape (1,) parameters."""
    orig_shape = x.shape
    D = orig_shape[-1]
    N = 1
    for s in orig_shape[:-1]:
        N *= s
    xf = x.reshape(N, D)

    per_buffer_bytes, vmem_cap = _vmem_budget()

    # Pick the largest 8-aligned row tile within the per-buffer budget.
    row_bytes = D * xf.dtype.itemsize
    budget_rows = (per_buffer_bytes // max(row_bytes, 1)) // 8 * 8
    tile_n = max(8, budget_rows)
    # Keep grid_n >= 2 whenever there is enough work so both v7x TensorCores
    # get a share of the grid (no effect on single-TC v5e/v6e).
    half_rows = max(8, pl.cdiv(pl.cdiv(N, 2), 8) * 8)
    n_pad8 = pl.cdiv(N, 8) * 8
    tile_n = min(tile_n, half_rows, n_pad8)       # multiple of 8

    # No explicit padding: grid uses cdiv and the ragged last block relies on
    # Pallas partial-block semantics (OOB reads are garbage but those rows'
    # writebacks are dropped; safe because the kernel is row-independent).
    grid_n = pl.cdiv(N, tile_n)

    # VMEM accounting: double-buffered in + out blocks plus f32 compute temps.
    block_bytes = tile_n * row_bytes
    f32_block = tile_n * D * 4
    needed = 4 * block_bytes + 3 * f32_block + (2 << 20)
    if needed > vmem_cap:
        raise ValueError(
            f"d_model={D} ({row_bytes} bytes/row) is too large for an 8-row "
            f"tile within the VMEM budget ({needed} > {vmem_cap} bytes); "
            "shard the feature dimension instead.")
    vmem_limit = int(min(max(needed, 32 << 20), vmem_cap))

    out = pl.pallas_call(
        functools.partial(_decoder_norm_kernel, eps=eps),
        out_shape=jax.ShapeDtypeStruct((N, D), x.dtype),
        grid_spec=pltpu.PrefetchScalarGridSpec(
            num_scalar_prefetch=0,
            grid=(grid_n,),
            in_specs=[
                pl.BlockSpec(memory_space=pltpu.MemorySpace.SMEM),  # alpha (1,)
                pl.BlockSpec(memory_space=pltpu.MemorySpace.SMEM),  # bias  (1,)
                pl.BlockSpec((tile_n, D), lambda i: (i, 0)),        # x rows
            ],
            out_specs=pl.BlockSpec((tile_n, D), lambda i: (i, 0)),
        ),
        compiler_params=pltpu.CompilerParams(
            dimension_semantics=("parallel",),   # shards grid across TCs (v7x)
            vmem_limit_bytes=vmem_limit,
        ),
    )(alpha, bias, xf)

    return out.reshape(orig_shape)


def decoder_forward(x, encoder_output, src_mask, tgt_mask,
                    layers=(), alpha=None, bias=None, eps=1e-6):
    """Mirror of Decoder.forward: sequential layers + final LayerNorm."""
    for layer in layers:
        x = layer(x, encoder_output, src_mask, tgt_mask)
    return layer_norm_pallas(x, alpha, bias, eps=eps)


def _ref_norm(x, alpha, bias, eps):
    d = x.shape[-1]
    mean = jnp.mean(x, axis=-1, keepdims=True)
    diff = x - mean
    std = jnp.sqrt(jnp.sum(diff * diff, axis=-1, keepdims=True)
                   / (d - 1 if d > 1 else 1))
    return alpha[0] * diff / (std + eps) + bias[0]


if __name__ == "__main__":
    key = jax.random.PRNGKey(0)
    kx, ke, k2 = jax.random.split(key, 3)

    # Main demo: lane-dense d_model (multiple of 128).
    batch, seq, d_model = 2, 16, 128
    x = jax.random.normal(kx, (batch, seq, d_model), dtype=jnp.float32)
    encoder_output = jax.random.normal(ke, (batch, seq, d_model), dtype=jnp.float32)
    src_mask = jnp.ones((batch, 1, 1, seq), dtype=jnp.float32)
    tgt_mask = jnp.ones((batch, 1, seq, seq), dtype=jnp.float32)

    # LayerNormalization.__init__: alpha = ones(1), bias = zeros(1).
    alpha = jnp.ones((1,), dtype=jnp.float32)
    bias = jnp.zeros((1,), dtype=jnp.float32)

    out = decoder_forward(x, encoder_output, src_mask, tgt_mask,
                          layers=(), alpha=alpha, bias=bias, eps=1e-6)
    jax.block_until_ready(out)
    ref = _ref_norm(x, alpha, bias, 1e-6)
    assert jnp.allclose(out, ref, atol=1e-5, rtol=1e-5), "mismatch vs reference"

    # Secondary check: N not a multiple of the tile and d_model not a multiple
    # of 128 (exercises the ragged last-block path; no wrapper pad/slice).
    x2 = jax.random.normal(k2, (3, 5, 96), dtype=jnp.float32)
    out2 = layer_norm_pallas(x2, alpha, bias, eps=1e-6)
    jax.block_until_ready(out2)
    ref2 = _ref_norm(x2, alpha, bias, 1e-6)
    assert jnp.allclose(out2, ref2, atol=1e-5, rtol=1e-5), "mismatch (ragged case)"

    print("KERNEL_OK")
</pallas_src>

<mosaic_0001>
module attributes {stable_mosaic.version = 11 : i64} {
  func.func @_decoder_norm_kernel(%arg0: i32, %arg1: memref<1xf32, #tpu.memory_space<smem>>, %arg2: memref<1xf32, #tpu.memory_space<smem>>, %arg3: memref<16x128xf32, #tpu.memory_space<vmem>>, %arg4: memref<16x128xf32, #tpu.memory_space<vmem>>) attributes {dimension_semantics = [#tpu.dimension_semantics<parallel>], iteration_bounds = array<i64: 2>, scalar_prefetch = 0 : i64, scratch_operands = 0 : i64, tpu.core_type = #tpu.core_type<tc>, window_params = [{transform_indices = @transform_0, window_bounds = array<i64: 1>}, {transform_indices = @transform_1, window_bounds = array<i64: 1>}, {transform_indices = @transform_2, window_bounds = array<i64: 16, 128>}, {transform_indices = @transform_3, window_bounds = array<i64: 16, 128>}]} {
    %c0 = arith.constant 0 : index
    %c0_0 = arith.constant 0 : index
    %0 = vector.load %arg3[%c0, %c0_0] : memref<16x128xf32, #tpu.memory_space<vmem>>, vector<16x128xf32>
    %cst = arith.constant dense<0.000000e+00> : vector<16xf32>
    %1 = vector.multi_reduction <add>, %0, %cst [1] : vector<16x128xf32> to vector<16xf32>
    %2 = vector.shape_cast %1 : vector<16xf32> to vector<16x1xf32>
    %3 = arith.mulf %0, %0 : vector<16x128xf32>
    %cst_1 = arith.constant dense<0.000000e+00> : vector<16xf32>
    %4 = vector.multi_reduction <add>, %3, %cst_1 [1] : vector<16x128xf32> to vector<16xf32>
    %5 = vector.shape_cast %4 : vector<16xf32> to vector<16x1xf32>
    %cst_2 = arith.constant 7.812500e-03 : f32
    %6 = vector.broadcast %cst_2 : f32 to vector<16x1xf32>
    %7 = arith.mulf %2, %6 : vector<16x1xf32>
    %8 = arith.mulf %2, %7 : vector<16x1xf32>
    %9 = arith.subf %5, %8 : vector<16x1xf32>
    %cst_3 = arith.constant 1.270000e+02 : f32
    %10 = vector.broadcast %cst_3 : f32 to vector<16x1xf32>
    %11 = arith.divf %9, %10 : vector<16x1xf32>
    %cst_4 = arith.constant 0.000000e+00 : f32
    %12 = vector.broadcast %cst_4 : f32 to vector<16x1xf32>
    %13 = arith.maximumf %11, %12 : vector<16x1xf32>
    %14 = math.sqrt %13 : vector<16x1xf32>
    %cst_5 = arith.constant 9.99999997E-7 : f32
    %15 = vector.broadcast %cst_5 : f32 to vector<16x1xf32>
    %16 = arith.addf %14, %15 : vector<16x1xf32>
    %17 = tpu.reciprocal %16 : vector<16x1xf32> -> vector<16x1xf32>
    %c0_6 = arith.constant 0 : index
    %18 = memref.load %arg1[%c0_6] : memref<1xf32, #tpu.memory_space<smem>>
    %19 = vector.broadcast %18 : f32 to vector<16x1xf32>
    %20 = arith.mulf %19, %17 : vector<16x1xf32>
    %c0_7 = arith.constant 0 : index
    %21 = memref.load %arg2[%c0_7] : memref<1xf32, #tpu.memory_space<smem>>
    %22 = arith.mulf %7, %20 : vector<16x1xf32>
    %23 = vector.broadcast %21 : f32 to vector<16x1xf32>
    %24 = arith.subf %23, %22 : vector<16x1xf32>
    %25 = vector.broadcast %20 : vector<16x1xf32> to vector<16x128xf32>
    %26 = arith.mulf %0, %25 : vector<16x128xf32>
    %27 = vector.broadcast %24 : vector<16x1xf32> to vector<16x128xf32>
    %28 = arith.addf %26, %27 : vector<16x128xf32>
    %c0_8 = arith.constant 0 : index
    %c0_9 = arith.constant 0 : index
    %29 = vector.load %arg4[%c0_8, %c0_9] : memref<16x128xf32, #tpu.memory_space<vmem>>, vector<16x128xf32>
    tpu.vector_store %arg4[%c0_8, %c0_9], %28 {strides = array<i32>} : memref<16x128xf32, #tpu.memory_space<vmem>>, vector<16x128xf32>,
    return
  }
  func.func @transform_0(%arg0: i32) -> i32 {
    %c0_i32 = arith.constant 0 : i32
    %c0_i32_0 = arith.constant 0 : i32
    return %c0_i32 : i32
  }
  func.func @transform_1(%arg0: i32) -> i32 {
    %c0_i32 = arith.constant 0 : i32
    %c0_i32_0 = arith.constant 0 : i32
    return %c0_i32 : i32
  }
  func.func @transform_2(%arg0: i32) -> (i32, i32) {
    %c0_i32 = arith.constant 0 : i32
    %c0_i32_0 = arith.constant 0 : i32
    return %arg0, %c0_i32 : i32, i32
  }
  func.func @transform_3(%arg0: i32) -> (i32, i32) {
    %c0_i32 = arith.constant 0 : i32
    %c0_i32_0 = arith.constant 0 : i32
    return %arg0, %c0_i32 : i32, i32
  }
}

</mosaic_0001>

<llo_original>
// kernel: tpu_custom_call.1
$region0: #{tpu_custom_call.1}
  #allocation0 [shape = 'u32[]', space=smem, size = 0x4, offset = 0x4, fixed_abs, tag = 'smem constant byte address 0x4 - core index']
  #allocation1 [shape = 'u32[144,128]{1,0:T(1,128)}', space=vmem, size = 0x12000, scoped, tag = 'internal scratch']
  #allocation2 [shape = 'f32[1]{0:T(128)S(6)}', space=smem, size = 0x200, scoped, tag = 'scoped memory for tpu_custom_call.1']
  #allocation3 [shape = 'f32[1]{0:T(128)S(6)}', space=smem, size = 0x200, scoped, tag = 'scoped memory for tpu_custom_call.1']
  %s0 = inlined_call_operand.<no memory space> [shape: f32[1], index: 0, kind: input, shape index: {}]
  %s1 = inlined_call_operand.<no memory space> [shape: f32[1], index: 1, kind: input, shape index: {}]
  %s2 = inlined_call_operand.hbm [shape: f32[32,128], index: 2, kind: input, shape index: {}]
  %s3 = inlined_call_operand.hbm [shape: f32[32,128], index: 3, kind: output, shape index: {}]
  %s4 = sld [smem:[#allocation0]]
  $region49: #{tpu_custom_call.1} parent=0
    _
  %s6 = ssub.s32 1, %s4
  %s7 = scalar_select 0, %s6, %s4
  %8 = sst [smem:[#allocation2]] %s0
  %9 = sst [smem:[#allocation3]] %s1
  $region1: #{tpu_custom_call.1} parent=0
    #allocation4 [shape = 'u8[16384]{0}', space=vmem, size = 0x4000, scoped, tag = 'input window, operand 2']
    #allocation5 [shape = 's32[2]{0}', space=sflag, size = 0x8, scoped, tag = 'scoped memory for tpu_custom_call.1']
    #allocation6 [shape = 's32[2]{0}', space=sflag, size = 0x8, scoped, tag = 'scoped memory for tpu_custom_call.1']
    #allocation7 [shape = 'u8[16384]{0}', space=vmem, size = 0x4000, scoped, tag = 'output window, operand 0']
    %10 = vsyncpa [#allocation5], 0
    %s11 = scalar_lea.sflag [#allocation5], 1
    %12 = vsyncpa %s11, 0
    %13 = vsyncpa [#allocation6], 0
    %s14 = scalar_lea.sflag [#allocation6], 1
    %15 = vsyncpa %s14, 0
    loop: start=0, step=1, limit=4
    $region2: #{tpu_custom_call.1} parent=1 // loop_pre_header
      _
    $region3: #{tpu_custom_call.1} parent=1 // loop_header
      %s17 = sphi 0, %s21
      %p18 = scmp.ge.s32.totalorder %s17, 4
      %s25 = sphi 0, %s25
      %s27 = sphi 0, %s25
      %s28 = sphi 0, %s27
      %s42 = sphi 0, %s28
      %s46 = sphi 0, %s46
      %s48 = sphi 0, %s46
      %s49 = sphi 0, %s48
      %s63 = sphi 0, %s49
      %s69 = sphi 0, %s71
      %s72 = sphi 0, %s69
      %s73 = sphi 0, %s72
      %s89 = sphi 0, %s73
      %s95 = sphi 0, %s97
      %s98 = sphi 0, %s95
      %s99 = sphi 0, %s98
      %s115 = sphi 0, %s99
    $region4: #{tpu_custom_call.1} parent=1 // loop_header_branch
      %20 = sbr.rel (%p18) target = $region8
    $region5: #{tpu_custom_call.1} parent=1 // loop_body
      %s22 = ssub.s32 %s17, 1
      %s23 = ssub.s32 %s17, 2
      %s24 = sadd.s32 %s17, 1
      %s26 = sadd.s32 %s25, 1
      %p29 = scmp.eq.s32.totalorder %s17, 1
      %p30 = scmp.ne.s32.totalorder %s25, %s27
      %p31 = scmp.eq.s32.totalorder %s17, 0
      %p32 = por %p30, %p31
      %p33 = scmp.ne.s32.totalorder %s25, %s27
      %p34 = scmp.eq.s32.totalorder %s22, 1
      %p35 = por %p33, %p34
      %p36 = scmp.ne.s32.totalorder %s27, %s28
      %p37 = scmp.eq.s32.totalorder %s22, 0
      %p38 = por %p36, %p37
      %p39 = scmp.ne.s32.totalorder %s27, %s28
      %p40 = scmp.eq.s32.totalorder %s23, 1
      %p41 = por %p39, %p40
      %p43 = scmp.ne.s32.totalorder %s28, %s42
      %p44 = scmp.eq.s32.totalorder %s23, 0
      %p45 = por %p43, %p44
      %s47 = sadd.s32 %s46, 1
      %p50 = scmp.eq.s32.totalorder %s17, 1
      %p51 = scmp.ne.s32.totalorder %s46, %s48
      %p52 = scmp.eq.s32.totalorder %s17, 0
      %p53 = por %p51, %p52
      %p54 = scmp.ne.s32.totalorder %s46, %s48
      %p55 = scmp.eq.s32.totalorder %s22, 1
      %p56 = por %p54, %p55
      %p57 = scmp.ne.s32.totalorder %s48, %s49
      %p58 = scmp.eq.s32.totalorder %s22, 0
      %p59 = por %p57, %p58
      %p60 = scmp.ne.s32.totalorder %s48, %s49
      %p61 = scmp.eq.s32.totalorder %s23, 1
      %p62 = por %p60, %p61
      %p64 = scmp.ne.s32.totalorder %s49, %s63
      %p65 = scmp.eq.s32.totalorder %s23, 0
      %p66 = por %p64, %p65
      %s67 = ssub.s32 %s17, %s24
      %p68 = scmp.eq.s32.totalorder %s67, 0
      %s70 = sadd.s32 %s69, 1
      %s71 = scalar_select %p68, %s69, %s70
      %p74 = pneg %p68
      %p75 = scmp.eq.s32.totalorder %s17, 1
      %p76 = por %p74, %p75
      %p77 = scmp.ne.s32.totalorder %s69, %s72
      %p78 = scmp.eq.s32.totalorder %s17, 0
      %p79 = por %p77, %p78
      %p80 = scmp.ne.s32.totalorder %s69, %s72
      %p81 = scmp.eq.s32.totalorder %s22, 1
      %p82 = por %p80, %p81
      %p83 = scmp.ne.s32.totalorder %s72, %s73
      %p84 = scmp.eq.s32.totalorder %s22, 0
      %p85 = por %p83, %p84
      %p86 = scmp.ne.s32.totalorder %s72, %s73
      %p87 = scmp.eq.s32.totalorder %s23, 1
      %p88 = por %p86, %p87
      %p90 = scmp.ne.s32.totalorder %s73, %s89
      %p91 = scmp.eq.s32.totalorder %s23, 0
      %p92 = por %p90, %p91
      %s93 = ssub.s32 %s17, %s24
      %p94 = scmp.eq.s32.totalorder %s93, 0
      %s96 = sadd.s32 %s95, 1
      %s97 = scalar_select %p94, %s95, %s96
      %p100 = pneg %p94
      %p101 = scmp.eq.s32.totalorder %s17, 1
      %p102 = por %p100, %p101
      %p103 = scmp.ne.s32.totalorder %s95, %s98
      %p104 = scmp.eq.s32.totalorder %s17, 0
      %p105 = por %p103, %p104
      %p106 = scmp.ne.s32.totalorder %s95, %s98
      %p107 = scmp.eq.s32.totalorder %s22, 1
      %p108 = por %p106, %p107
      %p109 = scmp.ne.s32.totalorder %s98, %s99
      %p110 = scmp.eq.s32.totalorder %s22, 0
      %p111 = por %p109, %p110
      %p112 = scmp.ne.s32.totalorder %s98, %s99
      %p113 = scmp.eq.s32.totalorder %s23, 1
      %p114 = por %p112, %p113
      %p116 = scmp.ne.s32.totalorder %s99, %s115
      %p117 = scmp.eq.s32.totalorder %s23, 0
      %p118 = por %p116, %p117
      %p119 = scmp.le.s32.totalorder 1, %s17
      %p120 = scmp.lt.s32.totalorder %s17, 3
      %p121 = pnand %p119, %p120
      %p122 = pneg %p121
      // Predicated region
      $region9: #{tpu_custom_call.1} parent=5 // pred_check
        _
      $region10: #{tpu_custom_call.1} parent=5 // pred_check_branch
        %124 = sbr.rel (%p121) target = $region12
      $region11: #{tpu_custom_call.1} parent=5 // pred_region
        %s125 = ssub.s32 %s17, 1
        // Predicated region
        $region13: #{tpu_custom_call.1} parent=11 // pred_check
          %p126 = pneg %p38
        $region14: #{tpu_custom_call.1} parent=11 // pred_check_branch
          %128 = sbr.rel (%p126) target = $region16
        $region15: #{tpu_custom_call.1} parent=11 // pred_region
          _
        $region16: #{tpu_custom_call.1} parent=11 // pred_fallthru
          _
        // Predicated region
        $region17: #{tpu_custom_call.1} parent=11 // pred_check
          %p129 = pneg %p59
        $region18: #{tpu_custom_call.1} parent=11 // pred_check_branch
          %131 = sbr.rel (%p129) target = $region20
        $region19: #{tpu_custom_call.1} parent=11 // pred_region
          _
        $region20: #{tpu_custom_call.1} parent=11 // pred_fallthru
          _
      $region12: #{tpu_custom_call.1} parent=5 // pred_fallthru
        _
      %p132 = scmp.lt.s32.totalorder %s17, 2
      // Predicated region
      $region21: #{tpu_custom_call.1} parent=5 // pred_check
        %p133 = pneg %p132
      $region22: #{tpu_custom_call.1} parent=5 // pred_check_branch
        %135 = sbr.rel (%p133) target = $region24
      $region23: #{tpu_custom_call.1} parent=5 // pred_region
        // Predicated region
        $region25: #{tpu_custom_call.1} parent=23 // pred_check
          %p136 = pneg %p79
        $region26: #{tpu_custom_call.1} parent=23 // pred_check_branch
          %138 = sbr.rel (%p136) target = $region28
        $region27: #{tpu_custom_call.1} parent=23 // pred_region
          %s139 = sand.u32 %s69, 1
          %s140 = scalar_lea.sflag [#allocation5], %s139
          %s141 = sand.u32 %s69, 1
          %s142 = smul.addr %s141, 16
          %s143 = scalar_lea.vmem [#allocation4], %s142
          %s144 = smul.u32 2, %s17
          %s146 = ssub.s32 256, 256
          %147 = vsyncadd %s140, %s146
          %s148 = smul.addr %s144, 128
          %s149 = scalar_lea.hbm %s2, %s148
          %s150 = sshll.u32 %s143, 4
          %s151 = int_to_ptr.vmem [resolvable:$true] %s150
          %156 = dma.hbm_to_vmem [thread:$0]  %s149, 256, %s151, %s140, 128, 128, 8
        $region28: #{tpu_custom_call.1} parent=23 // pred_fallthru
          _
      $region24: #{tpu_custom_call.1} parent=5 // pred_fallthru
        _
      %p157 = scmp.le.s32.totalorder 1, %s17
      %p158 = scmp.lt.s32.totalorder %s17, 3
      %p159 = pnand %p157, %p158
      %p160 = pneg %p159
      // Predicated region
      $region29: #{tpu_custom_call.1} parent=5 // pred_check
        _
      $region30: #{tpu_custom_call.1} parent=5 // pred_check_branch
        %162 = sbr.rel (%p159) target = $region32
      $region31: #{tpu_custom_call.1} parent=5 // pred_region
        %s163 = ssub.s32 %s17, 1
        %s164 = sand.u32 %s72, 1
        %s165 = scalar_lea.sflag [#allocation5], %s164
        %s166 = sand.u32 %s72, 1
        %s167 = smul.addr %s166, 16
        %s168 = scalar_lea.vmem [#allocation4], %s167
        // Predicated region
        $region33: #{tpu_custom_call.1} parent=31 // pred_check
          %p169 = pneg %p85
        $region34: #{tpu_custom_call.1} parent=31 // pred_check_branch
          %171 = sbr.rel (%p169) target = $region36
        $region35: #{tpu_custom_call.1} parent=31 // pred_region
          %172 = dma.done %s165, 256
        $region36: #{tpu_custom_call.1} parent=31 // pred_fallthru
          _
        %p173 = pneg %p38
        %p174 = pneg %p35
        %p175 = pneg %p59
        %p176 = pneg %p56
        %s177 = sand.u32 %s72, 1
        %s178 = scalar_lea.sflag [#allocation5], %s177
        %s179 = sand.u32 %s72, 1
        %s180 = smul.addr %s179, 16
        %s181 = scalar_lea.vmem [#allocation4], %s180
        %p182 = pneg %p85
        %p183 = pneg %p82
        %p184 = pneg %p111
        %p185 = pneg %p108
        %s186 = sand.u32 %s98, 1
        %s187 = scalar_lea.sflag [#allocation6], %s186
        %s188 = sand.u32 %s98, 1
        %s189 = smul.addr %s188, 16
        %s190 = scalar_lea.vmem [#allocation7], %s189
        %s191 = smul.u32 2, %s22
        %s192 = smul.u32 2, %s22
        %v193 = vld [vmem:[%s168] sm:$0xff]
        %v194 = vld [vmem:[%s168 + $0x8] sm:$0xff]
        %195 = vadd.xlane.f32.xlu0 %v193
        %v196 = vpop.xlane.xlu0 %195
        %197 = vadd.xlane.f32.xlu0 %v194
        %v198 = vpop.xlane.xlu0 %197
        %v199 = vmul.f32 %v193, %v193
        %v200 = vmul.f32 %v194, %v194
        %201 = vadd.xlane.f32.xlu0 %v199
        %v202 = vpop.xlane.xlu0 %201
        %203 = vadd.xlane.f32.xlu0 %v200
        %v204 = vpop.xlane.xlu0 %203
        %v205 = vmul.f32 %v196, 0.0078125
        %v206 = vmul.f32 %v198, 0.0078125
        %v207 = vmul.f32 %v196, %v205
        %v208 = vmul.f32 %v198, %v206
        %v209 = vsub.f32 %v202, %v207
        %v210 = vsub.f32 %v204, %v208
        %v211 = vrcp.pop 127.0
        %v212 = vmul.f32 %v209, %v211
        %v213 = vmul.f32 %v210, %v211
        %v214 = vmax.f32 %v212, 0.0
        %v215 = vmax.f32 %v213, 0.0
        %v216 = vrsqrt.pop %v214
        %v217 = vmul.f32 %v214, %v216
        %vm218 = vcmp.eq.f32.partialorder %v214, inf
        %v219 = vsel %vm218, %v214, %v217
        %vm220 = vcmp.eq.f32.partialorder %v214, 0.0
        %v221 = vand.u32 %v214, 2147483648
        %v222 = vsel %vm220, %v221, %v219
        %v223 = vrsqrt.pop %v215
        %v224 = vmul.f32 %v215, %v223
        %vm225 = vcmp.eq.f32.partialorder %v215, inf
        %v226 = vsel %vm225, %v215, %v224
        %vm227 = vcmp.eq.f32.partialorder %v215, 0.0
        %v228 = vand.u32 %v215, 2147483648
        %v229 = vsel %vm227, %v228, %v226
        %v230 = vadd.f32 %v222, 1e-06
        %v231 = vadd.f32 %v229, 1e-06
        %v232 = vrcp.pop %v230
        %v233 = vrcp.pop %v231
        %s234 = sld [smem:[#allocation2]]
        %v235 = vstv %s234
        %v236 = vmul.f32 %v235, %v232
        %v237 = vmul.f32 %v235, %v233
        %s238 = sld [smem:[#allocation3]]
        %v239 = vmul.f32 %v205, %v236
        %v240 = vmul.f32 %v206, %v237
        %v241 = vstv %s238
        %v242 = vsub.f32 %v241, %v239
        %v243 = vsub.f32 %v241, %v240
        %v244 = vmul.f32 %v193, %v236
        %v245 = vmul.f32 %v194, %v237
        %v246 = vadd.f32 %v244, %v242
        %v247 = vadd.f32 %v245, %v243
        %248 = vst [vmem:[%s190] sm:$0xff] %v246
        %249 = vst [vmem:[%s190 + $0x8] sm:$0xff] %v247
        %s250 = sand.u32 %s98, 1
        %s251 = scalar_lea.sflag [#allocation6], %s250
        %s252 = sand.u32 %s98, 1
        %s253 = smul.addr %s252, 16
        %s254 = scalar_lea.vmem [#allocation7], %s253
        // Predicated region
        $region37: #{tpu_custom_call.1} parent=31 // pred_check
          %p255 = pneg %p108
        $region38: #{tpu_custom_call.1} parent=31 // pred_check_branch
          %257 = sbr.rel (%p255) target = $region40
        $region39: #{tpu_custom_call.1} parent=31 // pred_region
          %s258 = smul.u32 2, %s22
          %s260 = ssub.s32 256, 256
          %261 = vsyncadd %s251, %s260
          %s262 = smul.addr %s258, 128
          %s263 = scalar_lea.hbm %s3, %s262
          %s264 = sshll.u32 %s254, 4
          %s265 = int_to_ptr.vmem [resolvable:$true] %s264
          %270 = dma.vmem_to_hbm [thread:$0]  %s265, 256, %s263, %s251, 128, 128, 8
        $region40: #{tpu_custom_call.1} parent=31 // pred_fallthru
          _
      $region32: #{tpu_custom_call.1} parent=5 // pred_fallthru
        _
      %p271 = scmp.le.s32.totalorder 2, %s17
      // Predicated region
      $region41: #{tpu_custom_call.1} parent=5 // pred_check
        %p272 = pneg %p271
      $region42: #{tpu_custom_call.1} parent=5 // pred_check_branch
        %274 = sbr.rel (%p272) target = $region44
      $region43: #{tpu_custom_call.1} parent=5 // pred_region
        %s275 = ssub.s32 %s17, 2
        // Predicated region
        $region45: #{tpu_custom_call.1} parent=43 // pred_check
          %p276 = pneg %p114
        $region46: #{tpu_custom_call.1} parent=43 // pred_check_branch
          %278 = sbr.rel (%p276) target = $region48
        $region47: #{tpu_custom_call.1} parent=43 // pred_region
          %s279 = sand.u32 %s99, 1
          %s280 = scalar_lea.sflag [#allocation6], %s279
          %s281 = sand.u32 %s99, 1
          %s282 = smul.addr %s281, 16
          %s283 = scalar_lea.vmem [#allocation7], %s282
          %284 = dma.done %s280, 256
        $region48: #{tpu_custom_call.1} parent=43 // pred_fallthru
          _
      $region44: #{tpu_custom_call.1} parent=5 // pred_fallthru
        _
    $region6: #{tpu_custom_call.1} parent=1 // loop_footer
      %s21 = sadd.s32 1, %s17
    $region7: #{tpu_custom_call.1} parent=1 // loop_footer_branch
      %16 = sbr.rel target = $region3
    $region8: #{tpu_custom_call.1} parent=1 // loop_exit
      _
    %285 = vsyncpa [#allocation5], 1
    %s286 = scalar_lea.sflag [#allocation5], 1
    %287 = vsyncpa %s286, 1
    %288 = vsyncpa [#allocation6], 1
    %s289 = scalar_lea.sflag [#allocation6], 1
    %290 = vsyncpa %s289, 1

</llo_original>
